<compile_context>
chip_gen: v7x
topology: tpu7x:2x2x1
jax: 0.10.0
libtpu: 0.0.40
codegen_flags: <defaults>
</compile_context>

<pallas_src>
import jax
import jax.numpy as jnp
from jax.experimental import pallas as pl
from jax.experimental.pallas import tpu as pltpu

D_EMB = 20   # embedding dim (per table)
D_IN = 40    # concat(user_vec, movie_vec)
D_H1 = 32    # fc1 out
D_H2 = 16    # fc2 out
LANE = 128   # TPU lane width


def _round_up(x, m):
    return ((x + m - 1) // m) * m


def mlp_kernel(u_ref, m_ref, w1u_ref, w1m_ref, b1_ref, w2_ref, b2_ref,
               w3_ref, b3_ref, o_ref):
    # u_ref/m_ref: (20, TB)   w1u/w1m: (32, 20)   b1: (32, 1)
    # w2: (16, 32)  b2: (16, 1)   w3: (16, 1)  b3: (1, 1)   o: (1, TB)
    h1 = (jnp.dot(w1u_ref[...], u_ref[...], preferred_element_type=jnp.float32)
          + jnp.dot(w1m_ref[...], m_ref[...], preferred_element_type=jnp.float32)
          + b1_ref[...])
    h1 = jnp.maximum(h1, 0.0)                                    # relu(fc1) -> (32, TB)
    h2 = jnp.dot(w2_ref[...], h1, preferred_element_type=jnp.float32) + b2_ref[...]
    h2 = jnp.maximum(h2, 0.0)                                    # relu(fc2) -> (16, TB)
    # final 16 -> 1 layer as VPU multiply + sublane reduce (skip the tiny MXU pass)
    o_ref[...] = jnp.sum(w3_ref[...] * h2, axis=0, keepdims=True) + b3_ref[...]


def init_params(key, num_users, num_movies):
    ks = jax.random.split(key, 8)
    scale = 0.1
    return {
        "user_emb": jax.random.normal(ks[0], (num_users, D_EMB), jnp.float32),
        "movie_emb": jax.random.normal(ks[1], (num_movies, D_EMB), jnp.float32),
        # PyTorch nn.Linear layout: weight [out, in], bias [out]
        "w1": scale * jax.random.normal(ks[2], (D_H1, D_IN), jnp.float32),
        "b1": scale * jax.random.normal(ks[3], (D_H1,), jnp.float32),
        "w2": scale * jax.random.normal(ks[4], (D_H2, D_H1), jnp.float32),
        "b2": scale * jax.random.normal(ks[5], (D_H2,), jnp.float32),
        "w3": scale * jax.random.normal(ks[6], (1, D_H2), jnp.float32),
        "b3": scale * jax.random.normal(ks[7], (1,), jnp.float32),
    }


def recommender_forward(params, user_ids, movie_ids, tile_b=1024):
    b = user_ids.shape[0]

    # Embedding gather (glue); transpose so batch lands on the lane axis.
    # TODO(synk): fuse the row gather into the kernel via scalar-prefetch + manual DMA
    # to drop this HBM round-trip of the gathered activations.
    u = params["user_emb"][user_ids].T      # (20, B)
    m = params["movie_emb"][movie_ids].T    # (20, B)

    # Batch tile: multiple of 128 lanes, no bigger than needed for small B.
    tb = min(_round_up(b, LANE), _round_up(tile_b, LANE))
    padded_b = _round_up(b, tb)
    if padded_b != b:
        u = jnp.pad(u, ((0, 0), (0, padded_b - b)))
        m = jnp.pad(m, ((0, 0), (0, padded_b - b)))

    # Split W1 into user/movie halves so the concat is never materialized.
    w1u = params["w1"][:, :D_EMB]            # (32, 20)
    w1m = params["w1"][:, D_EMB:]            # (32, 20)
    b1 = params["b1"].reshape(D_H1, 1)
    w2 = params["w2"]                        # (16, 32)
    b2 = params["b2"].reshape(D_H2, 1)
    w3 = params["w3"].reshape(D_H2, 1)       # (16, 1) column for the VPU reduce
    b3 = params["b3"].reshape(1, 1)

    const = lambda i: (0, 0)                 # weights stay VMEM-resident across steps
    out = pl.pallas_call(
        mlp_kernel,
        out_shape=jax.ShapeDtypeStruct((1, padded_b), jnp.float32),
        grid=(padded_b // tb,),
        in_specs=[
            pl.BlockSpec((D_EMB, tb), lambda i: (0, i)),   # user vecs tile
            pl.BlockSpec((D_EMB, tb), lambda i: (0, i)),   # movie vecs tile
            pl.BlockSpec((D_H1, D_EMB), const),            # w1 (user half)
            pl.BlockSpec((D_H1, D_EMB), const),            # w1 (movie half)
            pl.BlockSpec((D_H1, 1), const),                # b1
            pl.BlockSpec((D_H2, D_H1), const),             # w2
            pl.BlockSpec((D_H2, 1), const),                # b2
            pl.BlockSpec((D_H2, 1), const),                # w3
            pl.BlockSpec((1, 1), const),                   # b3
        ],
        out_specs=pl.BlockSpec((1, tb), lambda i: (0, i)),
        compiler_params=pltpu.CompilerParams(
            dimension_semantics=("parallel",)),
    )(u, m, w1u, w1m, b1, w2, b2, w3, b3)

    # mimic torch `.squeeze()`
    return jnp.squeeze(out[0, :b])


def reference_forward(params, user_ids, movie_ids):
    user_vec = params["user_emb"][user_ids]
    movie_vec = params["movie_emb"][movie_ids]
    x = jnp.concatenate([user_vec, movie_vec], axis=1)
    x = jnp.maximum(x @ params["w1"].T + params["b1"], 0.0)
    x = jnp.maximum(x @ params["w2"].T + params["b2"], 0.0)
    return jnp.squeeze(x @ params["w3"].T + params["b3"])


if __name__ == "__main__":
    key = jax.random.PRNGKey(0)
    num_users, num_movies, batch = 50, 80, 8

    kp, ku, km = jax.random.split(key, 3)
    params = init_params(kp, num_users, num_movies)
    user_ids = jax.random.randint(ku, (batch,), 0, num_users, dtype=jnp.int32)
    movie_ids = jax.random.randint(km, (batch,), 0, num_movies, dtype=jnp.int32)

    out = recommender_forward(params, user_ids, movie_ids)
    out = jax.block_until_ready(out)

    ref = reference_forward(params, user_ids, movie_ids)
    assert out.shape == (batch,), out.shape
    assert jnp.allclose(out, ref, atol=1e-5, rtol=1e-5), (out, ref)
    print("KERNEL_OK")
</pallas_src>

<mosaic_0001>
module attributes {stable_mosaic.version = 11 : i64} {
  func.func @mlp_kernel(%arg0: i32, %arg1: memref<20x128xf32, #tpu.memory_space<vmem>>, %arg2: memref<20x128xf32, #tpu.memory_space<vmem>>, %arg3: memref<32x20xf32, #tpu.memory_space<vmem>>, %arg4: memref<32x20xf32, #tpu.memory_space<vmem>>, %arg5: memref<32x1xf32, #tpu.memory_space<vmem>>, %arg6: memref<16x32xf32, #tpu.memory_space<vmem>>, %arg7: memref<16x1xf32, #tpu.memory_space<vmem>>, %arg8: memref<16x1xf32, #tpu.memory_space<vmem>>, %arg9: memref<1x1xf32, #tpu.memory_space<vmem>>, %arg10: memref<1x128xf32, #tpu.memory_space<vmem>>) attributes {dimension_semantics = [#tpu.dimension_semantics<parallel>], iteration_bounds = array<i64: 1>, scalar_prefetch = 0 : i64, scratch_operands = 0 : i64, tpu.core_type = #tpu.core_type<tc>, window_params = [{transform_indices = @transform_0, window_bounds = array<i64: 20, 128>}, {transform_indices = @transform_1, window_bounds = array<i64: 20, 128>}, {pipeline_mode = #tpu.pipeline_mode<synchronous>, transform_indices = @transform_2, window_bounds = array<i64: 32, 20>}, {pipeline_mode = #tpu.pipeline_mode<synchronous>, transform_indices = @transform_3, window_bounds = array<i64: 32, 20>}, {pipeline_mode = #tpu.pipeline_mode<synchronous>, transform_indices = @transform_4, window_bounds = array<i64: 32, 1>}, {pipeline_mode = #tpu.pipeline_mode<synchronous>, transform_indices = @transform_5, window_bounds = array<i64: 16, 32>}, {pipeline_mode = #tpu.pipeline_mode<synchronous>, transform_indices = @transform_6, window_bounds = array<i64: 16, 1>}, {pipeline_mode = #tpu.pipeline_mode<synchronous>, transform_indices = @transform_7, window_bounds = array<i64: 16, 1>}, {pipeline_mode = #tpu.pipeline_mode<synchronous>, transform_indices = @transform_8, window_bounds = array<i64: 1, 1>}, {transform_indices = @transform_9, window_bounds = array<i64: 1, 128>}]} {
    %c0 = arith.constant 0 : index
    %c0_0 = arith.constant 0 : index
    %0 = vector.load %arg3[%c0, %c0_0] : memref<32x20xf32, #tpu.memory_space<vmem>>, vector<32x20xf32>
    %c0_1 = arith.constant 0 : index
    %c0_2 = arith.constant 0 : index
    %1 = vector.load %arg1[%c0_1, %c0_2] : memref<20x128xf32, #tpu.memory_space<vmem>>, vector<20x128xf32>
    %cst = arith.constant dense<0.000000e+00> : vector<32x128xf32>
    %2 = tpu.matmul %0, %1, %cst {dimension_numbers = #tpu.dot_dimension_numbers<[1], [0], [0], [1], [0, 0, 1, 1], [], []>} : vector<32x20xf32>, vector<20x128xf32>, vector<32x128xf32> -> vector<32x128xf32>
    %c0_3 = arith.constant 0 : index
    %c0_4 = arith.constant 0 : index
    %3 = vector.load %arg4[%c0_3, %c0_4] : memref<32x20xf32, #tpu.memory_space<vmem>>, vector<32x20xf32>
    %c0_5 = arith.constant 0 : index
    %c0_6 = arith.constant 0 : index
    %4 = vector.load %arg2[%c0_5, %c0_6] : memref<20x128xf32, #tpu.memory_space<vmem>>, vector<20x128xf32>
    %cst_7 = arith.constant dense<0.000000e+00> : vector<32x128xf32>
    %5 = tpu.matmul %3, %4, %cst_7 {dimension_numbers = #tpu.dot_dimension_numbers<[1], [0], [0], [1], [0, 0, 1, 1], [], []>} : vector<32x20xf32>, vector<20x128xf32>, vector<32x128xf32> -> vector<32x128xf32>
    %6 = arith.addf %2, %5 : vector<32x128xf32>
    %c0_8 = arith.constant 0 : index
    %c0_9 = arith.constant 0 : index
    %7 = vector.load %arg5[%c0_8, %c0_9] : memref<32x1xf32, #tpu.memory_space<vmem>>, vector<32x1xf32>
    %8 = vector.broadcast %7 : vector<32x1xf32> to vector<32x128xf32>
    %9 = arith.addf %6, %8 : vector<32x128xf32>
    %cst_10 = arith.constant 0.000000e+00 : f32
    %10 = vector.broadcast %cst_10 : f32 to vector<32x128xf32>
    %11 = arith.maximumf %9, %10 : vector<32x128xf32>
    %c0_11 = arith.constant 0 : index
    %c0_12 = arith.constant 0 : index
    %12 = vector.load %arg6[%c0_11, %c0_12] : memref<16x32xf32, #tpu.memory_space<vmem>>, vector<16x32xf32>
    %cst_13 = arith.constant dense<0.000000e+00> : vector<16x128xf32>
    %13 = tpu.matmul %12, %11, %cst_13 {dimension_numbers = #tpu.dot_dimension_numbers<[1], [0], [0], [1], [0, 0, 1, 1], [], []>} : vector<16x32xf32>, vector<32x128xf32>, vector<16x128xf32> -> vector<16x128xf32>
    %c0_14 = arith.constant 0 : index
    %c0_15 = arith.constant 0 : index
    %14 = vector.load %arg7[%c0_14, %c0_15] : memref<16x1xf32, #tpu.memory_space<vmem>>, vector<16x1xf32>
    %15 = vector.broadcast %14 : vector<16x1xf32> to vector<16x128xf32>
    %16 = arith.addf %13, %15 : vector<16x128xf32>
    %cst_16 = arith.constant 0.000000e+00 : f32
    %17 = vector.broadcast %cst_16 : f32 to vector<16x128xf32>
    %18 = arith.maximumf %16, %17 : vector<16x128xf32>
    %c0_17 = arith.constant 0 : index
    %c0_18 = arith.constant 0 : index
    %19 = vector.load %arg8[%c0_17, %c0_18] : memref<16x1xf32, #tpu.memory_space<vmem>>, vector<16x1xf32>
    %20 = vector.broadcast %19 : vector<16x1xf32> to vector<16x128xf32>
    %21 = arith.mulf %20, %18 : vector<16x128xf32>
    %cst_19 = arith.constant dense<0.000000e+00> : vector<128xf32>
    %22 = vector.multi_reduction <add>, %21, %cst_19 [0] : vector<16x128xf32> to vector<128xf32>
    %23 = vector.shape_cast %22 : vector<128xf32> to vector<1x128xf32>
    %c0_20 = arith.constant 0 : index
    %c0_21 = arith.constant 0 : index
    %24 = vector.load %arg9[%c0_20, %c0_21] : memref<1x1xf32, #tpu.memory_space<vmem>>, vector<1x1xf32>
    %25 = vector.broadcast %24 : vector<1x1xf32> to vector<1x128xf32>
    %26 = arith.addf %23, %25 : vector<1x128xf32>
    %c0_22 = arith.constant 0 : index
    %c0_23 = arith.constant 0 : index
    %27 = vector.load %arg10[%c0_22, %c0_23] : memref<1x128xf32, #tpu.memory_space<vmem>>, vector<1x128xf32>
    tpu.vector_store %arg10[%c0_22, %c0_23], %26 {strides = array<i32>} : memref<1x128xf32, #tpu.memory_space<vmem>>, vector<1x128xf32>,
    return
  }
  func.func @transform_0(%arg0: i32) -> (i32, i32) {
    %c0_i32 = arith.constant 0 : i32
    %c0_i32_0 = arith.constant 0 : i32
    return %c0_i32, %arg0 : i32, i32
  }
  func.func @transform_1(%arg0: i32) -> (i32, i32) {
    %c0_i32 = arith.constant 0 : i32
    %c0_i32_0 = arith.constant 0 : i32
    return %c0_i32, %arg0 : i32, i32
  }
  func.func @transform_2(%arg0: i32) -> (i32, i32) {
    %c0_i32 = arith.constant 0 : i32
    %c0_i32_0 = arith.constant 0 : i32
    %c0_i32_1 = arith.constant 0 : i32
    return %c0_i32, %c0_i32_0 : i32, i32
  }
  func.func @transform_3(%arg0: i32) -> (i32, i32) {
    %c0_i32 = arith.constant 0 : i32
    %c0_i32_0 = arith.constant 0 : i32
    %c0_i32_1 = arith.constant 0 : i32
    return %c0_i32, %c0_i32_0 : i32, i32
  }
  func.func @transform_4(%arg0: i32) -> (i32, i32) {
    %c0_i32 = arith.constant 0 : i32
    %c0_i32_0 = arith.constant 0 : i32
    %c0_i32_1 = arith.constant 0 : i32
    return %c0_i32, %c0_i32_0 : i32, i32
  }
  func.func @transform_5(%arg0: i32) -> (i32, i32) {
    %c0_i32 = arith.constant 0 : i32
    %c0_i32_0 = arith.constant 0 : i32
    %c0_i32_1 = arith.constant 0 : i32
    return %c0_i32, %c0_i32_0 : i32, i32
  }
  func.func @transform_6(%arg0: i32) -> (i32, i32) {
    %c0_i32 = arith.constant 0 : i32
    %c0_i32_0 = arith.constant 0 : i32
    %c0_i32_1 = arith.constant 0 : i32
    return %c0_i32, %c0_i32_0 : i32, i32
  }
  func.func @transform_7(%arg0: i32) -> (i32, i32) {
    %c0_i32 = arith.constant 0 : i32
    %c0_i32_0 = arith.constant 0 : i32
    %c0_i32_1 = arith.constant 0 : i32
    return %c0_i32, %c0_i32_0 : i32, i32
  }
  func.func @transform_8(%arg0: i32) -> (i32, i32) {
    %c0_i32 = arith.constant 0 : i32
    %c0_i32_0 = arith.constant 0 : i32
    %c0_i32_1 = arith.constant 0 : i32
    return %c0_i32, %c0_i32_0 : i32, i32
  }
  func.func @transform_9(%arg0: i32) -> (i32, i32) {
    %c0_i32 = arith.constant 0 : i32
    %c0_i32_0 = arith.constant 0 : i32
    return %c0_i32, %arg0 : i32, i32
  }
}

</mosaic_0001>

<llo_original>
// kernel: tpu_custom_call.1
$region0: #{tpu_custom_call.1}
  #allocation0 [shape = 'u32[]', space=smem, size = 0x4, offset = 0x4, fixed_abs, tag = 'smem constant byte address 0x4 - core index']
  #allocation1 [shape = 'u32[144,128]{1,0:T(1,128)}', space=vmem, size = 0x12000, scoped, tag = 'internal scratch']
  #allocation2 [shape = 'f32[1,1]{1,0:T(1,128)S(1)}', space=vmem, size = 0x200, scoped, tag = 'scoped memory for tpu_custom_call.1']
  %s0 = inlined_call_operand.vmem [shape: f32[20,128], index: 0, kind: input, shape index: {}]
  %s1 = inlined_call_operand.vmem [shape: f32[20,128], index: 1, kind: input, shape index: {}]
  %s2 = inlined_call_operand.vmem [shape: f32[32,20], index: 2, kind: input, shape index: {}]
  %s3 = inlined_call_operand.vmem [shape: f32[32,20], index: 3, kind: input, shape index: {}]
  %s4 = inlined_call_operand.vmem [shape: f32[32,1], index: 4, kind: input, shape index: {}]
  %s5 = inlined_call_operand.vmem [shape: f32[16,32], index: 5, kind: input, shape index: {}]
  %s6 = inlined_call_operand.vmem [shape: f32[16,1], index: 6, kind: input, shape index: {}]
  %s7 = inlined_call_operand.vmem [shape: f32[16,1], index: 7, kind: input, shape index: {}]
  %s8 = inlined_call_operand.<no memory space> [shape: f32[1,1], index: 8, kind: input, shape index: {}]
  %s9 = inlined_call_operand.hbm [shape: f32[1,128], index: 9, kind: output, shape index: {}]
  %s10 = sld [smem:[#allocation0]]
  $region46: #{tpu_custom_call.1} parent=0
    _
  %s12 = ssub.s32 1, %s10
  %s13 = scalar_select 0, %s12, %s10
  %v14 = vstv %s8
  %15 = vst [vmem:[#allocation2] sm:$0x1] %v14
  $region1: #{tpu_custom_call.1} parent=0
    #allocation3 [shape = 'u8[512]{0}', space=vmem, size = 0x400, scoped, tag = 'output window, operand 0, single buffered']
    #allocation4 [shape = 's32[1]{0}', space=sflag, size = 0x4, scoped, tag = 'scoped memory for tpu_custom_call.1']
    %16 = vsyncpa [#allocation4], 0
    // Predicated region
    $region2: #{tpu_custom_call.1} parent=1 // pred_check
      _
    $region3: #{tpu_custom_call.1} parent=1 // pred_check_branch
      %18 = sbr.rel (0) target = $region5
    $region4: #{tpu_custom_call.1} parent=1 // pred_region
      _
    $region5: #{tpu_custom_call.1} parent=1 // pred_fallthru
      _
    // Predicated region
    $region6: #{tpu_custom_call.1} parent=1 // pred_check
      _
    $region7: #{tpu_custom_call.1} parent=1 // pred_check_branch
      %20 = sbr.rel (0) target = $region9
    $region8: #{tpu_custom_call.1} parent=1 // pred_region
      _
    $region9: #{tpu_custom_call.1} parent=1 // pred_fallthru
      _
    // Predicated region
    $region10: #{tpu_custom_call.1} parent=1 // pred_check
      _
    $region11: #{tpu_custom_call.1} parent=1 // pred_check_branch
      %22 = sbr.rel (0) target = $region13
    $region12: #{tpu_custom_call.1} parent=1 // pred_region
      _
    $region13: #{tpu_custom_call.1} parent=1 // pred_fallthru
      _
    // Predicated region
    $region14: #{tpu_custom_call.1} parent=1 // pred_check
      _
    $region15: #{tpu_custom_call.1} parent=1 // pred_check_branch
      %24 = sbr.rel (0) target = $region17
    $region16: #{tpu_custom_call.1} parent=1 // pred_region
      _
    $region17: #{tpu_custom_call.1} parent=1 // pred_fallthru
      _
    // Predicated region
    $region18: #{tpu_custom_call.1} parent=1 // pred_check
      _
    $region19: #{tpu_custom_call.1} parent=1 // pred_check_branch
      %26 = sbr.rel (0) target = $region21
    $region20: #{tpu_custom_call.1} parent=1 // pred_region
      _
    $region21: #{tpu_custom_call.1} parent=1 // pred_fallthru
      _
    // Predicated region
    $region22: #{tpu_custom_call.1} parent=1 // pred_check
      _
    $region23: #{tpu_custom_call.1} parent=1 // pred_check_branch
      %28 = sbr.rel (0) target = $region25
    $region24: #{tpu_custom_call.1} parent=1 // pred_region
      _
    $region25: #{tpu_custom_call.1} parent=1 // pred_fallthru
      _
    // Predicated region
    $region26: #{tpu_custom_call.1} parent=1 // pred_check
      _
    $region27: #{tpu_custom_call.1} parent=1 // pred_check_branch
      %30 = sbr.rel (0) target = $region29
    $region28: #{tpu_custom_call.1} parent=1 // pred_region
      _
    $region29: #{tpu_custom_call.1} parent=1 // pred_fallthru
      _
    // Predicated region
    $region30: #{tpu_custom_call.1} parent=1 // pred_check
      _
    $region31: #{tpu_custom_call.1} parent=1 // pred_check_branch
      %32 = sbr.rel (0) target = $region33
    $region32: #{tpu_custom_call.1} parent=1 // pred_region
      _
    $region33: #{tpu_custom_call.1} parent=1 // pred_fallthru
      _
    // Predicated region
    $region34: #{tpu_custom_call.1} parent=1 // pred_check
      _
    $region35: #{tpu_custom_call.1} parent=1 // pred_check_branch
      %34 = sbr.rel (0) target = $region37
    $region36: #{tpu_custom_call.1} parent=1 // pred_region
      _
    $region37: #{tpu_custom_call.1} parent=1 // pred_fallthru
      _
    %v35 = vld [vmem:[%s2] sm:$0xff]
    %v36 = vld [vmem:[%s2 + $0x8] sm:$0xff]
    %v37 = vld [vmem:[%s2 + $0x10] sm:$0xff]
    %v38 = vld [vmem:[%s2 + $0x18] sm:$0xff]
    %v39 = vld [vmem:[%s0] sm:$0xff]
    %v40 = vld [vmem:[%s0 + $0x8] sm:$0xff]
    %v41 = vld [vmem:[%s0 + $0x10] sm:$0xf]
    %v42 = vld [vmem:[%s3] sm:$0xff]
    %v43 = vld [vmem:[%s3 + $0x8] sm:$0xff]
    %v44 = vld [vmem:[%s3 + $0x10] sm:$0xff]
    %v45 = vld [vmem:[%s3 + $0x18] sm:$0xff]
    %v46 = vld [vmem:[%s1] sm:$0xff]
    %v47 = vld [vmem:[%s1 + $0x8] sm:$0xff]
    %v48 = vld [vmem:[%s1 + $0x10] sm:$0xf]
    %vm49 = vcmask 162816
    %v51 = vsel %vm49, %v42, 0
    %v54 = vsel %vm49, %v43, 0
    %v57 = vsel %vm49, %v44, 0
    %v60 = vsel %vm49, %v45, 0
    %vm62 = vcmask 1043456
    %v64 = vsel %vm62, %v48, 0
    %66 = vmatprep.subr.mxu0 0.0
    %67 = vmatpush1.msra.mxu0 %v46
    %68 = vmatprep.subr.mxu0 0.0
    %69 = vmatpush1.msra.mxu0 %v47
    %70 = vmatprep.subr.mxu0 0.0
    %71 = vmatpush1.msra.mxu0 %v64
    %72 = vmatprep.subr.mxu0 0.0
    %73 = vmatpush1.msra.mxu0 0.0
    %74 = vmatprep.subr.mxu0 0.0
    %75 = vmatpush1.msra.mxu0 0.0
    %76 = vmatprep.subr.mxu0 0.0
    %77 = vmatpush1.msra.mxu0 0.0
    %78 = vmatprep.subr.mxu0 0.0
    %79 = vmatpush1.msra.mxu0 0.0
    %80 = vmatprep.subr.mxu0 0.0
    %81 = vmatpush1.msra.mxu0 0.0
    %82 = vmatprep.subr.mxu0 0.0
    %83 = vmatpush1.msra.mxu0 0.0
    %84 = vmatprep.subr.mxu0 0.0
    %85 = vmatpush1.msra.mxu0 0.0
    %86 = vmatprep.subr.mxu0 0.0
    %87 = vmatpush1.msra.mxu0 0.0
    %88 = vmatprep.subr.mxu0 0.0
    %89 = vmatpush1.msra.mxu0 0.0
    %90 = vmatprep.subr.mxu0 0.0
    %91 = vmatpush1.msra.mxu0 0.0
    %92 = vmatprep.subr.mxu0 0.0
    %93 = vmatpush1.msra.mxu0 0.0
    %94 = vmatprep.subr.mxu0 0.0
    %95 = vmatpush1.msra.mxu0 0.0
    %96 = vmatprep.subr.mxu0 0.0
    %97 = vmatpush1.msra.mxu0 0.0
    %98 = vmatprep.subr.mxu0 0.0
    %99 = vmatpush1.msra.mxu0 0.0
    %100 = vmatprep.subr.mxu0 0.0
    %101 = vmatpush1.msra.mxu0 0.0
    %102 = vmatprep.subr.mxu0 0.0
    %103 = vmatpush1.msra.mxu0 0.0
    %104 = vmatprep.subr.mxu0 0.0
    %105 = vmatpush1.msra.mxu0 0.0
    %106 = vmatprep.subr.mxu0 0.0
    %107 = vmatpush1.msra.mxu0 0.0
    %108 = vmatprep.subr.mxu0 0.0
    %109 = vmatpush1.msra.mxu0 0.0
    %110 = vmatprep.subr.mxu0 0.0
    %111 = vmatpush1.msra.mxu0 0.0
    %112 = vmatprep.subr.mxu0 0.0
    %113 = vmatpush1.msra.mxu0 0.0
    %114 = vmatprep.subr.mxu0 0.0
    %115 = vmatpush1.msra.mxu0 0.0
    %116 = vmatprep.subr.mxu0 0.0
    %117 = vmatpush1.msra.mxu0 0.0
    %118 = vmatprep.subr.mxu0 0.0
    %119 = vmatpush1.msra.mxu0 0.0
    %120 = vmatprep.subr.mxu0 0.0
    %121 = vmatpush1.msra.mxu0 0.0
    %122 = vmatprep.subr.mxu0 0.0
    %123 = vmatpush1.msra.mxu0 0.0
    %124 = vmatprep.subr.mxu0 0.0
    %125 = vmatpush1.msra.mxu0 0.0
    %126 = vmatprep.subr.mxu0 0.0
    %127 = vmatpush1.msra.mxu0 0.0
    %128 = vmatprep.subr.mxu0 0.0
    %129 = vmatpush1.msra.mxu0 0.0
    %130 = vmatprep.mubr.f32.mxu0 0.0
    %131 = vmatmul.mubr.f32.gmra.mrb[0].mxu0 %v51
    %v132 = vpop.f32.mrb[0].mxu0
    %v133 = vadd.f32 0.0, %v132
    %v134 = vpop.f32.mrb[0].mxu0
    %135 = vmatprep.mubr.f32.mxu0 0.0
    %136 = vmatmul.mubr.f32.gmra.mrb[0].mxu0 %v54
    %v137 = vpop.f32.mrb[0].mxu0
    %v138 = vadd.f32 0.0, %v137
    %v139 = vpop.f32.mrb[0].mxu0
    %140 = vmatprep.mubr.f32.mxu0 0.0
    %141 = vmatmul.mubr.f32.gmra.mrb[0].mxu0 %v57
    %v142 = vpop.f32.mrb[0].mxu0
    %v143 = vadd.f32 0.0, %v142
    %v144 = vpop.f32.mrb[0].mxu0
    %145 = vmatprep.mubr.f32.mxu0 0.0
    %146 = vmatmul.mubr.f32.gmra.mrb[0].mxu0 %v60
    %v147 = vpop.f32.mrb[0].mxu0
    %v148 = vadd.f32 0.0, %v147
    %v149 = vpop.f32.mrb[0].mxu0
    %150 = vdwg.mxu0
    %v152 = vsel %vm49, %v35, 0
    %v155 = vsel %vm49, %v36, 0
    %v158 = vsel %vm49, %v37, 0
    %v161 = vsel %vm49, %v38, 0
    %v164 = vsel %vm62, %v41, 0
    %166 = vmatprep.subr.mxu0 0.0
    %167 = vmatpush1.msra.mxu0 %v39
    %168 = vmatprep.subr.mxu0 0.0
    %169 = vmatpush1.msra.mxu0 %v40
    %170 = vmatprep.subr.mxu0 0.0
    %171 = vmatpush1.msra.mxu0 %v164
    %172 = vmatprep.subr.mxu0 0.0
    %173 = vmatpush1.msra.mxu0 0.0
    %174 = vmatprep.subr.mxu0 0.0
    %175 = vmatpush1.msra.mxu0 0.0
    %176 = vmatprep.subr.mxu0 0.0
    %177 = vmatpush1.msra.mxu0 0.0
    %178 = vmatprep.subr.mxu0 0.0
    %179 = vmatpush1.msra.mxu0 0.0
    %180 = vmatprep.subr.mxu0 0.0
    %181 = vmatpush1.msra.mxu0 0.0
    %182 = vmatprep.subr.mxu0 0.0
    %183 = vmatpush1.msra.mxu0 0.0
    %184 = vmatprep.subr.mxu0 0.0
    %185 = vmatpush1.msra.mxu0 0.0
    %186 = vmatprep.subr.mxu0 0.0
    %187 = vmatpush1.msra.mxu0 0.0
    %188 = vmatprep.subr.mxu0 0.0
    %189 = vmatpush1.msra.mxu0 0.0
    %190 = vmatprep.subr.mxu0 0.0
    %191 = vmatpush1.msra.mxu0 0.0
    %192 = vmatprep.subr.mxu0 0.0
    %193 = vmatpush1.msra.mxu0 0.0
    %194 = vmatprep.subr.mxu0 0.0
    %195 = vmatpush1.msra.mxu0 0.0
    %196 = vmatprep.subr.mxu0 0.0
    %197 = vmatpush1.msra.mxu0 0.0
    %198 = vmatprep.subr.mxu0 0.0
    %199 = vmatpush1.msra.mxu0 0.0
    %200 = vmatprep.subr.mxu0 0.0
    %201 = vmatpush1.msra.mxu0 0.0
    %202 = vmatprep.subr.mxu0 0.0
    %203 = vmatpush1.msra.mxu0 0.0
    %204 = vmatprep.subr.mxu0 0.0
    %205 = vmatpush1.msra.mxu0 0.0
    %206 = vmatprep.subr.mxu0 0.0
    %207 = vmatpush1.msra.mxu0 0.0
    %208 = vmatprep.subr.mxu0 0.0
    %209 = vmatpush1.msra.mxu0 0.0
    %210 = vmatprep.subr.mxu0 0.0
    %211 = vmatpush1.msra.mxu0 0.0
    %212 = vmatprep.subr.mxu0 0.0
    %213 = vmatpush1.msra.mxu0 0.0
    %214 = vmatprep.subr.mxu0 0.0
    %215 = vmatpush1.msra.mxu0 0.0
    %216 = vmatprep.subr.mxu0 0.0
    %217 = vmatpush1.msra.mxu0 0.0
    %218 = vmatprep.subr.mxu0 0.0
    %219 = vmatpush1.msra.mxu0 0.0
    %220 = vmatprep.subr.mxu0 0.0
    %221 = vmatpush1.msra.mxu0 0.0
    %222 = vmatprep.subr.mxu0 0.0
    %223 = vmatpush1.msra.mxu0 0.0
    %224 = vmatprep.subr.mxu0 0.0
    %225 = vmatpush1.msra.mxu0 0.0
    %226 = vmatprep.subr.mxu0 0.0
    %227 = vmatpush1.msra.mxu0 0.0
    %228 = vmatprep.subr.mxu0 0.0
    %229 = vmatpush1.msra.mxu0 0.0
    %230 = vmatprep.mubr.f32.mxu0 0.0
    %231 = vmatmul.mubr.f32.gmra.mrb[0].mxu0 %v152
    %v232 = vpop.f32.mrb[0].mxu0
    %v233 = vadd.f32 %v133, %v232
    %v234 = vpop.f32.mrb[0].mxu0
    %235 = vmatprep.mubr.f32.mxu0 0.0
    %236 = vmatmul.mubr.f32.gmra.mrb[0].mxu0 %v155
    %v237 = vpop.f32.mrb[0].mxu0
    %v238 = vadd.f32 %v138, %v237
    %v239 = vpop.f32.mrb[0].mxu0
    %240 = vmatprep.mubr.f32.mxu0 0.0
    %241 = vmatmul.mubr.f32.gmra.mrb[0].mxu0 %v158
    %v242 = vpop.f32.mrb[0].mxu0
    %v243 = vadd.f32 %v143, %v242
    %v244 = vpop.f32.mrb[0].mxu0
    %245 = vmatprep.mubr.f32.mxu0 0.0
    %246 = vmatmul.mubr.f32.gmra.mrb[0].mxu0 %v161
    %v247 = vpop.f32.mrb[0].mxu0
    %v248 = vadd.f32 %v148, %v247
    %v249 = vpop.f32.mrb[0].mxu0
    %250 = vdwg.mxu0
    %v251 = vld [vmem:[%s4] sm:$0xff]
    %v252 = vld [vmem:[%s4 + $0x8] sm:$0xff]
    %v253 = vld [vmem:[%s4 + $0x10] sm:$0xff]
    %v254 = vld [vmem:[%s4 + $0x18] sm:$0xff]
    %256 = vset.pattern.permute.xlu0 0
    %257 = vperm.xlu0 %256, %v251
    %v258 = vpop.permute.xlu0 %257
    %261 = vset.pattern.permute.xlu0 0
    %262 = vperm.xlu0 %261, %v252
    %v263 = vpop.permute.xlu0 %262
    %266 = vset.pattern.permute.xlu0 0
    %267 = vperm.xlu0 %266, %v253
    %v268 = vpop.permute.xlu0 %267
    %271 = vset.pattern.permute.xlu0 0
    %272 = vperm.xlu0 %271, %v254
    %v273 = vpop.permute.xlu0 %272
    %v275 = vadd.f32 %v233, %v258
    %v276 = vadd.f32 %v238, %v263
    %v277 = vadd.f32 %v243, %v268
    %v278 = vadd.f32 %v248, %v273
    %v279 = vmax.f32 %v275, 0.0
    %v280 = vmax.f32 %v276, 0.0
    %v281 = vmax.f32 %v277, 0.0
    %v282 = vmax.f32 %v278, 0.0
    %v283 = vld [vmem:[%s5] sm:$0xff]
    %v284 = vld [vmem:[%s5 + $0x8] sm:$0xff]
    %v285 = vld [vmem:[%s6] sm:$0xff]
    %v286 = vld [vmem:[%s6 + $0x8] sm:$0xff]
    %288 = vset.pattern.permute.xlu0 0
    %289 = vperm.xlu0 %288, %v285
    %v290 = vpop.permute.xlu0 %289
    %293 = vset.pattern.permute.xlu0 0
    %294 = vperm.xlu0 %293, %v286
    %v295 = vpop.permute.xlu0 %294
    %vm297 = vcmask 261120
    %v299 = vsel %vm297, %v283, 0
    %v302 = vsel %vm297, %v284, 0
    %304 = vmatprep.subr.mxu0 0.0
    %305 = vmatpush1.msra.mxu0 %v279
    %306 = vmatprep.subr.mxu0 0.0
    %307 = vmatpush1.msra.mxu0 %v280
    %308 = vmatprep.subr.mxu0 0.0
    %309 = vmatpush1.msra.mxu0 %v281
    %310 = vmatprep.subr.mxu0 0.0
    %311 = vmatpush1.msra.mxu0 %v282
    %312 = vmatprep.subr.mxu0 0.0
    %313 = vmatpush1.msra.mxu0 0.0
    %314 = vmatprep.subr.mxu0 0.0
    %315 = vmatpush1.msra.mxu0 0.0
    %316 = vmatprep.subr.mxu0 0.0
    %317 = vmatpush1.msra.mxu0 0.0
    %318 = vmatprep.subr.mxu0 0.0
    %319 = vmatpush1.msra.mxu0 0.0
    %320 = vmatprep.subr.mxu0 0.0
    %321 = vmatpush1.msra.mxu0 0.0
    %322 = vmatprep.subr.mxu0 0.0
    %323 = vmatpush1.msra.mxu0 0.0
    %324 = vmatprep.subr.mxu0 0.0
    %325 = vmatpush1.msra.mxu0 0.0
    %326 = vmatprep.subr.mxu0 0.0
    %327 = vmatpush1.msra.mxu0 0.0
    %328 = vmatprep.subr.mxu0 0.0
    %329 = vmatpush1.msra.mxu0 0.0
    %330 = vmatprep.subr.mxu0 0.0
    %331 = vmatpush1.msra.mxu0 0.0
    %332 = vmatprep.subr.mxu0 0.0
    %333 = vmatpush1.msra.mxu0 0.0
    %334 = vmatprep.subr.mxu0 0.0
    %335 = vmatpush1.msra.mxu0 0.0
    %336 = vmatprep.subr.mxu0 0.0
    %337 = vmatpush1.msra.mxu0 0.0
    %338 = vmatprep.subr.mxu0 0.0
    %339 = vmatpush1.msra.mxu0 0.0
    %340 = vmatprep.subr.mxu0 0.0
    %341 = vmatpush1.msra.mxu0 0.0
    %342 = vmatprep.subr.mxu0 0.0
    %343 = vmatpush1.msra.mxu0 0.0
    %344 = vmatprep.subr.mxu0 0.0
    %345 = vmatpush1.msra.mxu0 0.0
    %346 = vmatprep.subr.mxu0 0.0
    %347 = vmatpush1.msra.mxu0 0.0
    %348 = vmatprep.subr.mxu0 0.0
    %349 = vmatpush1.msra.mxu0 0.0
    %350 = vmatprep.subr.mxu0 0.0
    %351 = vmatpush1.msra.mxu0 0.0
    %352 = vmatprep.subr.mxu0 0.0
    %353 = vmatpush1.msra.mxu0 0.0
    %354 = vmatprep.subr.mxu0 0.0
    %355 = vmatpush1.msra.mxu0 0.0
    %356 = vmatprep.subr.mxu0 0.0
    %357 = vmatpush1.msra.mxu0 0.0
    %358 = vmatprep.subr.mxu0 0.0
    %359 = vmatpush1.msra.mxu0 0.0
    %360 = vmatprep.subr.mxu0 0.0
    %361 = vmatpush1.msra.mxu0 0.0
    %362 = vmatprep.subr.mxu0 0.0
    %363 = vmatpush1.msra.mxu0 0.0
    %364 = vmatprep.subr.mxu0 0.0
    %365 = vmatpush1.msra.mxu0 0.0
    %366 = vmatprep.subr.mxu0 0.0
    %367 = vmatpush1.msra.mxu0 0.0
    %368 = vmatprep.mubr.f32.mxu0 0.0
    %369 = vmatmul.mubr.f32.gmra.mrb[0].mxu0 %v299
    %v370 = vpop.f32.mrb[0].mxu0
    %v371 = vadd.f32 %v290, %v370
    %v372 = vpop.f32.mrb[0].mxu0
    %373 = vmatprep.mubr.f32.mxu0 0.0
    %374 = vmatmul.mubr.f32.gmra.mrb[0].mxu0 %v302
    %v375 = vpop.f32.mrb[0].mxu0
    %v376 = vadd.f32 %v295, %v375
    %v377 = vpop.f32.mrb[0].mxu0
    %378 = vdwg.mxu0
    %v379 = vmax.f32 %v371, 0.0
    %v380 = vmax.f32 %v376, 0.0
    %v381 = vld [vmem:[%s7] sm:$0xff]
    %v382 = vld [vmem:[%s7 + $0x8] sm:$0xff]
    %384 = vset.pattern.permute.xlu0 0
    %385 = vperm.xlu0 %384, %v381
    %v386 = vpop.permute.xlu0 %385
    %389 = vset.pattern.permute.xlu0 0
    %390 = vperm.xlu0 %389, %v382
    %v391 = vpop.permute.xlu0 %390
    %v393 = vmul.f32 %v386, %v379
    %v394 = vmul.f32 %v391, %v380
    %v395 = vadd.f32 %v393, %v394
    %v396 = vrot.slane %v395, 4
    %v397 = vadd.f32 %v395, %v396
    %v398 = vrot.slane %v397, 2
    %v399 = vadd.f32 %v397, %v398
    %v400 = vrot.slane %v399, 1
    %v401 = vadd.f32 %v399, %v400
    %v402 = vld [vmem:[#allocation2] sm:$0x1]
    %404 = vset.pattern.permute.xlu0 0
    %405 = vperm.xlu0 %404, %v402
    %v406 = vpop.permute.xlu0 %405
    %v408 = vlaneseq
    %v409 = vshrl.u32 %v408, 7
    %v410 = vsub.s32 0, %v409
    %v411 = vrot.slane %v406, %v410
    %v412 = vadd.f32 %v401, %v411
    %413 = vst [vmem:[#allocation3] sm:$0x1] %v412
    // Predicated region
    $region38: #{tpu_custom_call.1} parent=1 // pred_check
      _
    $region39: #{tpu_custom_call.1} parent=1 // pred_check_branch
      %415 = sbr.rel (0) target = $region41
    $region40: #{tpu_custom_call.1} parent=1 // pred_region
      %s417 = ssub.s32 16, 16
      %418 = vsyncadd [#allocation4], %s417
      %s420 = sshll.u32 [#allocation3], 4
      %s421 = int_to_ptr.vmem [resolvable:$true] %s420
      %423 = dma.vmem_to_hbm [thread:$0]  %s421, 16, %s9, [#allocation4]
    $region41: #{tpu_custom_call.1} parent=1 // pred_fallthru
      _
    // Predicated region
    $region42: #{tpu_custom_call.1} parent=1 // pred_check
      _
    $region43: #{tpu_custom_call.1} parent=1 // pred_check_branch
      %425 = sbr.rel (0) target = $region45
    $region44: #{tpu_custom_call.1} parent=1 // pred_region
      %426 = dma.done [#allocation4], 16
    $region45: #{tpu_custom_call.1} parent=1 // pred_fallthru
      _
    %427 = vsyncpa [#allocation4], 1

</llo_original>
